<compile_context>
chip_gen: v7x
topology: tpu7x:2x2x1
jax: 0.10.0
libtpu: 0.0.40
codegen_flags: <defaults>
</compile_context>

<pallas_src>
import math

import jax
import jax.numpy as jnp
from jax.experimental import pallas as pl
from jax.experimental.pallas import tpu as pltpu

_LANES = 128


def _square_kernel(x_ref, o_ref):
    x = x_ref[...]
    if jnp.issubdtype(x_ref.dtype, jnp.floating) and x_ref.dtype != jnp.float32:
        # Sub-32-bit float math up/down-converts on the VPU anyway (v5e has no
        # bf16 ALUs at all); be explicit so we only round once, on the store.
        x = x.astype(jnp.float32)
    o_ref[...] = (x * x).astype(o_ref.dtype)


def pallas_square(
    x: jax.Array,
    *,
    block_rows: int = 2048,          # 2048 x 128 x 4B = 1 MiB per f32 buffer
    min_pallas_elems: int = 1 << 15,  # below this, XLA fusion beats any kernel
    force_pallas: bool = False,
) -> jax.Array:
    """Elementwise x**2: lane-dense tiled Pallas TPU kernel with XLA fallback."""
    n = math.prod(x.shape) if x.shape else 1
    if n == 0 or (n < min_pallas_elems and not force_pallas):
        # Fused XLA elementwise op is strictly faster for tiny tensors.
        return x * x

    orig_shape, dtype = x.shape, x.dtype

    # --- lane-dense layout plumbing (wrapper side, never inside the kernel) ---
    rows = pl.cdiv(n, _LANES)
    flat = x.reshape(-1)
    pad = rows * _LANES - n
    if pad:
        flat = jnp.pad(flat, (0, pad))
    x2d = flat.reshape(rows, _LANES)

    # --- tiling: one full-extent block for small inputs, big row-tiles else ---
    if rows <= block_rows:
        tile_rows = rows          # full-dim block (exempt from (8,128) rule)
    else:
        tile_rows = block_rows    # multiple of 8; ragged last block is masked
    grid = (pl.cdiv(rows, tile_rows),)

    out2d = pl.pallas_call(
        _square_kernel,
        out_shape=jax.ShapeDtypeStruct((rows, _LANES), dtype),
        grid=grid,
        in_specs=[pl.BlockSpec((tile_rows, _LANES), lambda i: (i, 0))],
        out_specs=pl.BlockSpec((tile_rows, _LANES), lambda i: (i, 0)),
        compiler_params=pltpu.CompilerParams(
            dimension_semantics=("parallel",),  # shard row-tiles across TCs (v7x)
        ),
    )(x2d)

    out_flat = out2d.reshape(-1)
    if pad:
        out_flat = out_flat[:n]
    return out_flat.reshape(orig_shape)


class Lambda:
    """JAX analogue of torchlayers.Lambda: wraps any callable as a 'module'."""

    def __init__(self, function):
        self.function = function

    def __call__(self, *args, **kwargs):
        return self.function(*args, **kwargs)


if __name__ == "__main__":
    key = jax.random.PRNGKey(0)
    k0, k1, k2 = jax.random.split(key, 3)

    # 1) Docstring example shape torch.randn(64, 20); force the Pallas path so
    #    the kernel is exercised even though default policy would use XLA.
    x_small = jax.random.normal(k0, (64, 20), dtype=jnp.float32)
    model = Lambda(lambda t: pallas_square(t, force_pallas=True))
    out_small = jax.block_until_ready(model(x_small))
    ref_small = x_small * x_small
    assert out_small.shape == ref_small.shape and out_small.dtype == ref_small.dtype
    assert jnp.allclose(out_small, ref_small, atol=1e-6, rtol=1e-6)

    # 2) Same shape through the default policy (tiny-input XLA fallback path).
    out_fb = jax.block_until_ready(Lambda(pallas_square)(x_small))
    assert jnp.allclose(out_fb, ref_small, atol=1e-6, rtol=1e-6)

    # 3) Larger input exercising the tiled grid path (2048 rows of 128 lanes).
    x_big = jax.random.normal(k1, (1024, 256), dtype=jnp.float32)
    out_big = jax.block_until_ready(pallas_square(x_big))
    assert jnp.allclose(out_big, x_big * x_big, atol=1e-6, rtol=1e-6)

    # 4) Ragged bf16 input: flat padding + masked edge rows + f32 compute path.
    x_bf16 = jax.random.normal(k2, (33, 50), dtype=jnp.bfloat16)
    out_bf16 = jax.block_until_ready(pallas_square(x_bf16, force_pallas=True))
    ref_bf16 = (x_bf16.astype(jnp.float32) ** 2).astype(jnp.bfloat16)
    assert out_bf16.dtype == jnp.bfloat16
    assert jnp.allclose(
        out_bf16.astype(jnp.float32), ref_bf16.astype(jnp.float32),
        atol=1e-2, rtol=1e-2,
    )

    # TODO(synk): Lambda accepts arbitrary callables; only the documented
    # elementwise-square example is backed by a Pallas kernel here.
    print("KERNEL_OK")
</pallas_src>

<mosaic_0001>
module attributes {stable_mosaic.version = 11 : i64} {
  func.func @_square_kernel(%arg0: i32, %arg1: memref<10x128xf32, #tpu.memory_space<vmem>>, %arg2: memref<10x128xf32, #tpu.memory_space<vmem>>) attributes {dimension_semantics = [#tpu.dimension_semantics<parallel>], iteration_bounds = array<i64: 1>, scalar_prefetch = 0 : i64, scratch_operands = 0 : i64, tpu.core_type = #tpu.core_type<tc>, window_params = [{transform_indices = @transform_0, window_bounds = array<i64: 10, 128>}, {transform_indices = @transform_1, window_bounds = array<i64: 10, 128>}]} {
    %c0 = arith.constant 0 : index
    %c0_0 = arith.constant 0 : index
    %0 = vector.load %arg1[%c0, %c0_0] : memref<10x128xf32, #tpu.memory_space<vmem>>, vector<10x128xf32>
    %1 = arith.mulf %0, %0 : vector<10x128xf32>
    %c0_1 = arith.constant 0 : index
    %c0_2 = arith.constant 0 : index
    %2 = vector.load %arg2[%c0_1, %c0_2] : memref<10x128xf32, #tpu.memory_space<vmem>>, vector<10x128xf32>
    tpu.vector_store %arg2[%c0_1, %c0_2], %1 {strides = array<i32>} : memref<10x128xf32, #tpu.memory_space<vmem>>, vector<10x128xf32>,
    return
  }
  func.func @transform_0(%arg0: i32) -> (i32, i32) {
    %c0_i32 = arith.constant 0 : i32
    %c0_i32_0 = arith.constant 0 : i32
    return %arg0, %c0_i32 : i32, i32
  }
  func.func @transform_1(%arg0: i32) -> (i32, i32) {
    %c0_i32 = arith.constant 0 : i32
    %c0_i32_0 = arith.constant 0 : i32
    return %arg0, %c0_i32 : i32, i32
  }
}

</mosaic_0001>

<llo_original>
// kernel: tpu_custom_call.1
$region0: #{tpu_custom_call.1}
  #allocation0 [shape = 'u32[]', space=smem, size = 0x4, offset = 0x4, fixed_abs, tag = 'smem constant byte address 0x4 - core index']
  #allocation1 [shape = 'u32[144,128]{1,0:T(1,128)}', space=vmem, size = 0x12000, scoped, tag = 'internal scratch']
  %s0 = inlined_call_operand.hbm [shape: f32[10,128], index: 0, kind: input, shape index: {}]
  %s1 = inlined_call_operand.hbm [shape: f32[10,128], index: 1, kind: output, shape index: {}]
  %s2 = sld [smem:[#allocation0]]
  $region18: #{tpu_custom_call.1} parent=0
    _
  %s4 = ssub.s32 1, %s2
  %s5 = scalar_select 0, %s4, %s2
  $region1: #{tpu_custom_call.1} parent=0
    #allocation2 [shape = 'u8[8192]{0}', space=vmem, size = 0x2000, scoped, tag = 'input window, operand 0, single buffered']
    #allocation3 [shape = 's32[1]{0}', space=sflag, size = 0x4, scoped, tag = 'scoped memory for tpu_custom_call.1']
    #allocation4 [shape = 's32[1]{0}', space=sflag, size = 0x4, scoped, tag = 'scoped memory for tpu_custom_call.1']
    #allocation5 [shape = 'u8[8192]{0}', space=vmem, size = 0x2000, scoped, tag = 'output window, operand 0, single buffered']
    %6 = vsyncpa [#allocation3], 0
    %7 = vsyncpa [#allocation4], 0
    // Predicated region
    $region2: #{tpu_custom_call.1} parent=1 // pred_check
      _
    $region3: #{tpu_custom_call.1} parent=1 // pred_check_branch
      %9 = sbr.rel (0) target = $region5
    $region4: #{tpu_custom_call.1} parent=1 // pred_region
      %s11 = ssub.s32 256, 256
      %12 = vsyncadd [#allocation3], %s11
      %s13 = sshll.u32 [#allocation2], 4
      %s14 = int_to_ptr.vmem [resolvable:$true] %s13
      %19 = dma.hbm_to_vmem [thread:$0]  %s0, 256, %s14, [#allocation3], 128, 128, 8
    $region5: #{tpu_custom_call.1} parent=1 // pred_fallthru
      _
    // Predicated region
    $region6: #{tpu_custom_call.1} parent=1 // pred_check
      _
    $region7: #{tpu_custom_call.1} parent=1 // pred_check_branch
      %21 = sbr.rel (0) target = $region9
    $region8: #{tpu_custom_call.1} parent=1 // pred_region
      %22 = dma.done [#allocation3], 256
    $region9: #{tpu_custom_call.1} parent=1 // pred_fallthru
      _
    %v23 = vld [vmem:[#allocation2] sm:$0xff]
    %v24 = vld [vmem:[#allocation2 + $0x8] sm:$0x3]
    %v25 = vmul.f32 %v23, %v23
    %v26 = vmul.f32 %v24, %v24
    %27 = vst [vmem:[#allocation5] sm:$0xff] %v25
    %28 = vst [vmem:[#allocation5 + $0x8] sm:$0x3] %v26
    // Predicated region
    $region10: #{tpu_custom_call.1} parent=1 // pred_check
      _
    $region11: #{tpu_custom_call.1} parent=1 // pred_check_branch
      %30 = sbr.rel (0) target = $region13
    $region12: #{tpu_custom_call.1} parent=1 // pred_region
      %s32 = ssub.s32 256, 256
      %33 = vsyncadd [#allocation4], %s32
      %s34 = sshll.u32 [#allocation5], 4
      %s35 = int_to_ptr.vmem [resolvable:$true] %s34
      %40 = dma.vmem_to_hbm [thread:$0]  %s35, 256, %s1, [#allocation4], 128, 128, 8
    $region13: #{tpu_custom_call.1} parent=1 // pred_fallthru
      _
    // Predicated region
    $region14: #{tpu_custom_call.1} parent=1 // pred_check
      _
    $region15: #{tpu_custom_call.1} parent=1 // pred_check_branch
      %42 = sbr.rel (0) target = $region17
    $region16: #{tpu_custom_call.1} parent=1 // pred_region
      %43 = dma.done [#allocation4], 256
    $region17: #{tpu_custom_call.1} parent=1 // pred_fallthru
      _
    %44 = vsyncpa [#allocation3], 1
    %45 = vsyncpa [#allocation4], 1

</llo_original>
